<compile_context>
chip_gen: v7x
topology: tpu7x:2x2x1
jax: 0.10.0
libtpu: 0.0.40
codegen_flags: <defaults>
</compile_context>

<pallas_src>
import functools

import numpy as np
import jax
import jax.numpy as jnp
from jax.experimental import pallas as pl
from jax.experimental.pallas import tpu as pltpu


def _round_up(a, b):
    return -(-a // b) * b


def _vmem_budgets():
    """Generation-aware (tile budget, vmem_limit_bytes).

    128 MiB VMEM parts (v5e/v6e): big budget so large in_features still gets
    big tiles.  64 MiB part (v7x): conservative budget so double-buffered
    tiles + f32 intermediates never spill-thrash.
    """
    vmem_cap = 64 * 1024 * 1024  # conservative default (v7x per-TC VMEM)
    try:
        info = pltpu.get_tpu_info()
        vmem_cap = int(getattr(info, "vmem_capacity_bytes", vmem_cap))
    except Exception:
        pass
    if vmem_cap >= 96 * 1024 * 1024:          # v5e / v6e (128 MiB)
        return 80 * 1024 * 1024, 100 * 1024 * 1024
    return 28 * 1024 * 1024, 40 * 1024 * 1024  # v7x (64 MiB)


def _pick_row_tile(num_target, in_features, layer_dims, x_itemsize,
                   vmem_budget_bytes):
    """Pick the node/row tile TM (multiple of 256 => lane-dense, MXU-filling)."""
    dims = [int(in_features)] + [int(d) for d in layer_dims]
    out_features = dims[-1]
    # VMEM-resident params: compute-dtype (bf16) weights + f32 bias tiles,
    # rounded up to (8, 128) tiles.
    param_bytes = 0
    for i_f, o_f in zip(dims[:-1], dims[1:]):
        param_bytes += _round_up(o_f, 8) * _round_up(i_f, 128) * 2
        param_bytes += 8 * 128 * 4
    # Per target-row VMEM cost: double-buffered x tile (lane-padded), double-
    # buffered out tile, and ~3 live f32 intermediates of the widest layer.
    per_row_bytes = (
        2 * _round_up(in_features, 128) * x_itemsize
        + 2 * _round_up(out_features, 8) * 4
        + 3 * _round_up(max(dims), 8) * 4
    )
    tm_budget = (vmem_budget_bytes - param_bytes) // max(per_row_bytes, 1)
    # Memory-bound kernel: size TM so each grid step streams >= ~2 MiB of x
    # (and >= 4096 rows), amortizing the ~0.35 us fixed per-step overhead.
    row_bytes = max(in_features * x_itemsize, 1)
    tm_traffic = max(4096, _round_up((2 * 1024 * 1024) // row_bytes, 256))
    tm = min(tm_budget, tm_traffic)
    tm = max(256, (tm // 256) * 256)   # 256-multiple keeps v6e/v7x MXU N full

    rows = _round_up(max(int(num_target), 1), 256)
    # v7x megacore: keep >= 2 grid tiles when there is enough work so both
    # TensorCores stream (row axis is "parallel"); no-op on v5e/v6e.
    if rows >= 2 * 256:
        tm = min(tm, _round_up(rows // 2, 256))
    return int(min(tm, rows))


def _mlp_kernel(n_layers, compute_dtype, x_ref, *refs):
    """Feature-major fused MLP forward + log_softmax.

    x_ref : [TM, in_features]              (one row tile of the node features)
    refs  : (w0, b0, ..., w_{L-1}, b_{L-1}, o_ref)
            w_i : [out_f, in_f]  (PyTorch nn.Linear layout, compute_dtype)
            b_i : [out_f, 1]     (f32, broadcasts across the lane/row axis)
    o_ref : [out_features, TM]             (lane-dense feature-major output)

    Linear -> ReLU between every two linears, NO activation after the last
    linear (matches the module), then log_softmax over the feature axis
    (axis 0 here == dim=-1 of the PyTorch output), computed in f32.
    """
    o_ref = refs[-1]
    params = refs[:-1]

    # Layer 0 absorbs the row-major -> feature-major transpose into the
    # matmul:  H = W0 @ X^T  (contract the in_features axis of both operands).
    x = x_ref[...].astype(compute_dtype)
    h = jax.lax.dot_general(
        params[0][...], x,
        dimension_numbers=(((1,), (1,)), ((), ())),
        preferred_element_type=jnp.float32,
    ) + params[1][...]

    for i in range(1, n_layers):
        h = jnp.maximum(h, 0.0)  # ReLU between linears (f32)
        h = jnp.dot(
            params[2 * i][...], h.astype(compute_dtype),
            preferred_element_type=jnp.float32,
        ) + params[2 * i + 1][...]

    # Numerically stable log_softmax over the feature (sublane) axis, in f32.
    m = jnp.max(h, axis=0, keepdims=True)
    s = h - m
    lse = jnp.log(jnp.sum(jnp.exp(s), axis=0, keepdims=True))
    o_ref[...] = (s - lse).astype(o_ref.dtype)


def prepare_params(weights, biases, compute_dtype=jnp.bfloat16):
    """One-time parameter prep, hoisted out of the per-call forward path:
    compute-dtype weights in PyTorch [out_f, in_f] layout and f32 [out_f, 1]
    biases that broadcast across the lane/row axis inside the kernel."""
    params = []
    for w, b in zip(weights, biases):
        o_f = int(w.shape[0])
        params.append(jnp.asarray(w, compute_dtype))
        params.append(jnp.asarray(b, jnp.float32).reshape(o_f, 1))
    return params


def mlp_forward(x, adjs, params, *, compute_dtype=jnp.bfloat16,
                out_dtype=jnp.float32, feature_major_output=False):
    """Mirror of MLP.forward(x, adjs) (eval mode).

    x      : [num_nodes, in_features].  Streamed as-is; providing bf16 x
             upstream halves the dominant HBM traffic (a per-call astype here
             would add a full HBM pass, so it is intentionally not done).
    params : output of prepare_params(weights, biases).
    Returns log_softmax(MLP(x[:size[1]]), dim=-1), shape
    [size[1], out_features]  (or the kernel-native feature-major
    [out_features, size[1]] when feature_major_output=True, which skips the
    post-kernel transpose pass).  size[1] must be a static Python int.
    """
    _, _, size = adjs[-1]
    num_target = int(size[1])
    n_layers = len(params) // 2
    in_features = int(x.shape[-1])
    layer_dims = [int(params[2 * i].shape[0]) for i in range(n_layers)]
    out_features = layer_dims[-1]

    vmem_budget, vmem_limit = _vmem_budgets()
    tm = _pick_row_tile(num_target, in_features, layer_dims,
                        x.dtype.itemsize, vmem_budget)
    n_tiles = pl.cdiv(num_target, tm)
    padded_target = n_tiles * tm

    # Keep every x block fully in-bounds (only pads when the rounded-up
    # target count exceeds num_nodes, i.e. the tiny-graph corner case).
    if padded_target > x.shape[0]:
        x = jnp.pad(x, ((0, padded_target - x.shape[0]), (0, 0)))

    # NOTE: a lane-dense folded x layout (e.g. [rows//4, 128] for
    # in_features=32) would make the x DMA fully dense; not applied here
    # pending measurement (the review marks it measure-before-commit).
    args = [x]
    specs = [pl.BlockSpec((tm, in_features), lambda i: (i, 0))]
    for p in params:
        args.append(p)
        specs.append(pl.BlockSpec(tuple(int(d) for d in p.shape),
                                  lambda i: (0, 0)))  # VMEM-resident params

    kernel = functools.partial(_mlp_kernel, n_layers, compute_dtype)
    out_fm = pl.pallas_call(
        kernel,
        out_shape=jax.ShapeDtypeStruct((out_features, padded_target),
                                       out_dtype),
        grid=(n_tiles,),
        in_specs=specs,
        out_specs=pl.BlockSpec((out_features, tm), lambda i: (0, i)),
        compiler_params=pltpu.CompilerParams(
            dimension_semantics=("parallel",),
            vmem_limit_bytes=vmem_limit,
        ),
    )(*args)

    if feature_major_output:
        return out_fm[:, :num_target]
    # Back to the module's [num_target, out_features] orientation (tiny array).
    return out_fm[:, :num_target].T


def init_params(key, in_features, out_features, n_steps, bias=True):
    """nn.Linear-style init: uniform(-1/sqrt(in_f), 1/sqrt(in_f)), PyTorch
    [out_f, in_f] weight layout."""
    steps = np.linspace(in_features, out_features, n_steps + 1, dtype=int)
    steps[0] = in_features
    steps[-1] = out_features
    weights, biases = [], []
    for in_f, out_f in zip(steps[:-1], steps[1:]):
        key, kw, kb = jax.random.split(key, 3)
        bound = 1.0 / np.sqrt(float(in_f))
        w = jax.random.uniform(kw, (int(out_f), int(in_f)), jnp.float32,
                               -bound, bound)
        if bias:
            b = jax.random.uniform(kb, (int(out_f),), jnp.float32,
                                   -bound, bound)
        else:
            b = jnp.zeros((int(out_f),), jnp.float32)
        weights.append(w)
        biases.append(b)
    return weights, biases


def mlp_reference(x, adjs, weights, biases):
    """Pure-JAX f32 reference of MLP.forward."""
    _, _, size = adjs[-1]
    h = x[: size[1]].astype(jnp.float32)
    for i, (w, b) in enumerate(zip(weights, biases)):
        h = h @ w.T + b
        if i < len(weights) - 1:
            h = jnp.maximum(h, 0.0)
    return jax.nn.log_softmax(h, axis=-1)


if __name__ == "__main__":
    key = jax.random.PRNGKey(0)

    in_features = 32
    out_features = 8
    n_steps = 3            # -> layer dims 32 -> 24 -> 16 -> 8
    num_nodes = 16
    num_target = 8         # size[1] of the last adj

    k_x, k_p = jax.random.split(key)
    x = jax.random.normal(k_x, (num_nodes, in_features), jnp.float32)
    # adjs mimics the GraphSAGE loader output: (edge_index, e_id, size)
    adjs = [(None, None, (num_nodes, num_target))]

    weights, biases = init_params(k_p, in_features, out_features, n_steps,
                                  bias=True)
    params = prepare_params(weights, biases)   # one-time prep (hoisted)

    out = jax.block_until_ready(mlp_forward(x, adjs, params))
    ref = mlp_reference(x, adjs, weights, biases)

    assert out.shape == (num_target, out_features), out.shape
    # log_softmax rows must exp-sum to 1 (softmax math is done in f32)
    row_sums = jnp.sum(jnp.exp(out), axis=-1)
    assert jnp.allclose(row_sums, 1.0, atol=1e-4), row_sums
    # bf16 matmul inputs with f32 accumulation: ~1e-2-level vs f32 reference
    max_err = jnp.max(jnp.abs(out - ref))
    assert jnp.allclose(out, ref, atol=5e-2), max_err

    print("KERNEL_OK")
</pallas_src>

<mosaic_0001>
module attributes {stable_mosaic.version = 11 : i64} {
  func.func @_mlp_kernel(%arg0: i32, %arg1: memref<256x32xf32, #tpu.memory_space<vmem>>, %arg2: memref<24x32xbf16, #tpu.memory_space<vmem>>, %arg3: memref<24x1xf32, #tpu.memory_space<vmem>>, %arg4: memref<16x24xbf16, #tpu.memory_space<vmem>>, %arg5: memref<16x1xf32, #tpu.memory_space<vmem>>, %arg6: memref<8x16xbf16, #tpu.memory_space<vmem>>, %arg7: memref<8x1xf32, #tpu.memory_space<vmem>>, %arg8: memref<8x256xf32, #tpu.memory_space<vmem>>) attributes {dimension_semantics = [#tpu.dimension_semantics<parallel>], iteration_bounds = array<i64: 1>, scalar_prefetch = 0 : i64, scratch_operands = 0 : i64, tpu.core_type = #tpu.core_type<tc>, window_params = [{transform_indices = @transform_0, window_bounds = array<i64: 256, 32>}, {pipeline_mode = #tpu.pipeline_mode<synchronous>, transform_indices = @transform_1, window_bounds = array<i64: 24, 32>}, {pipeline_mode = #tpu.pipeline_mode<synchronous>, transform_indices = @transform_2, window_bounds = array<i64: 24, 1>}, {pipeline_mode = #tpu.pipeline_mode<synchronous>, transform_indices = @transform_3, window_bounds = array<i64: 16, 24>}, {pipeline_mode = #tpu.pipeline_mode<synchronous>, transform_indices = @transform_4, window_bounds = array<i64: 16, 1>}, {pipeline_mode = #tpu.pipeline_mode<synchronous>, transform_indices = @transform_5, window_bounds = array<i64: 8, 16>}, {pipeline_mode = #tpu.pipeline_mode<synchronous>, transform_indices = @transform_6, window_bounds = array<i64: 8, 1>}, {transform_indices = @transform_7, window_bounds = array<i64: 8, 256>}]} {
    %c0 = arith.constant 0 : index
    %c0_0 = arith.constant 0 : index
    %0 = vector.load %arg1[%c0, %c0_0] : memref<256x32xf32, #tpu.memory_space<vmem>>, vector<256x32xf32>
    %1 = arith.truncf %0 : vector<256x32xf32> to vector<256x32xbf16>
    %c0_1 = arith.constant 0 : index
    %c0_2 = arith.constant 0 : index
    %2 = vector.load %arg2[%c0_1, %c0_2] : memref<24x32xbf16, #tpu.memory_space<vmem>>, vector<24x32xbf16>
    %cst = arith.constant dense<0.000000e+00> : vector<24x256xf32>
    %3 = tpu.matmul %2, %1, %cst {dimension_numbers = #tpu.dot_dimension_numbers<[1], [1], [0], [0], [0, 0, 1, 0], [], []>} : vector<24x32xbf16>, vector<256x32xbf16>, vector<24x256xf32> -> vector<24x256xf32>
    %c0_3 = arith.constant 0 : index
    %c0_4 = arith.constant 0 : index
    %4 = vector.load %arg3[%c0_3, %c0_4] : memref<24x1xf32, #tpu.memory_space<vmem>>, vector<24x1xf32>
    %5 = vector.broadcast %4 : vector<24x1xf32> to vector<24x256xf32>
    %6 = arith.addf %3, %5 : vector<24x256xf32>
    %cst_5 = arith.constant 0.000000e+00 : f32
    %7 = vector.broadcast %cst_5 : f32 to vector<24x256xf32>
    %8 = arith.maximumf %6, %7 : vector<24x256xf32>
    %c0_6 = arith.constant 0 : index
    %c0_7 = arith.constant 0 : index
    %9 = vector.load %arg4[%c0_6, %c0_7] : memref<16x24xbf16, #tpu.memory_space<vmem>>, vector<16x24xbf16>
    %10 = arith.truncf %8 : vector<24x256xf32> to vector<24x256xbf16>
    %cst_8 = arith.constant dense<0.000000e+00> : vector<16x256xf32>
    %11 = tpu.matmul %9, %10, %cst_8 {dimension_numbers = #tpu.dot_dimension_numbers<[1], [0], [0], [1], [0, 0, 1, 1], [], []>} : vector<16x24xbf16>, vector<24x256xbf16>, vector<16x256xf32> -> vector<16x256xf32>
    %c0_9 = arith.constant 0 : index
    %c0_10 = arith.constant 0 : index
    %12 = vector.load %arg5[%c0_9, %c0_10] : memref<16x1xf32, #tpu.memory_space<vmem>>, vector<16x1xf32>
    %13 = vector.broadcast %12 : vector<16x1xf32> to vector<16x256xf32>
    %14 = arith.addf %11, %13 : vector<16x256xf32>
    %cst_11 = arith.constant 0.000000e+00 : f32
    %15 = vector.broadcast %cst_11 : f32 to vector<16x256xf32>
    %16 = arith.maximumf %14, %15 : vector<16x256xf32>
    %c0_12 = arith.constant 0 : index
    %c0_13 = arith.constant 0 : index
    %17 = vector.load %arg6[%c0_12, %c0_13] : memref<8x16xbf16, #tpu.memory_space<vmem>>, vector<8x16xbf16>
    %18 = arith.truncf %16 : vector<16x256xf32> to vector<16x256xbf16>
    %cst_14 = arith.constant dense<0.000000e+00> : vector<8x256xf32>
    %19 = tpu.matmul %17, %18, %cst_14 {dimension_numbers = #tpu.dot_dimension_numbers<[1], [0], [0], [1], [0, 0, 1, 1], [], []>} : vector<8x16xbf16>, vector<16x256xbf16>, vector<8x256xf32> -> vector<8x256xf32>
    %c0_15 = arith.constant 0 : index
    %c0_16 = arith.constant 0 : index
    %20 = vector.load %arg7[%c0_15, %c0_16] : memref<8x1xf32, #tpu.memory_space<vmem>>, vector<8x1xf32>
    %21 = vector.broadcast %20 : vector<8x1xf32> to vector<8x256xf32>
    %22 = arith.addf %19, %21 : vector<8x256xf32>
    %cst_17 = arith.constant dense<0xFF800000> : vector<256xf32>
    %23 = vector.multi_reduction <maximumf>, %22, %cst_17 [0] : vector<8x256xf32> to vector<256xf32>
    %24 = vector.shape_cast %23 : vector<256xf32> to vector<1x256xf32>
    %25 = vector.broadcast %24 : vector<1x256xf32> to vector<8x256xf32>
    %26 = arith.subf %22, %25 : vector<8x256xf32>
    %27 = math.exp %26 : vector<8x256xf32>
    %cst_18 = arith.constant dense<0.000000e+00> : vector<256xf32>
    %28 = vector.multi_reduction <add>, %27, %cst_18 [0] : vector<8x256xf32> to vector<256xf32>
    %29 = vector.shape_cast %28 : vector<256xf32> to vector<1x256xf32>
    %30 = math.log %29 : vector<1x256xf32>
    %31 = vector.broadcast %30 : vector<1x256xf32> to vector<8x256xf32>
    %32 = arith.subf %26, %31 : vector<8x256xf32>
    %c0_19 = arith.constant 0 : index
    %c0_20 = arith.constant 0 : index
    %33 = vector.load %arg8[%c0_19, %c0_20] : memref<8x256xf32, #tpu.memory_space<vmem>>, vector<8x256xf32>
    tpu.vector_store %arg8[%c0_19, %c0_20], %32 {strides = array<i32>} : memref<8x256xf32, #tpu.memory_space<vmem>>, vector<8x256xf32>,
    return
  }
  func.func @transform_0(%arg0: i32) -> (i32, i32) {
    %c0_i32 = arith.constant 0 : i32
    %c0_i32_0 = arith.constant 0 : i32
    return %arg0, %c0_i32 : i32, i32
  }
  func.func @transform_1(%arg0: i32) -> (i32, i32) {
    %c0_i32 = arith.constant 0 : i32
    %c0_i32_0 = arith.constant 0 : i32
    %c0_i32_1 = arith.constant 0 : i32
    return %c0_i32, %c0_i32_0 : i32, i32
  }
  func.func @transform_2(%arg0: i32) -> (i32, i32) {
    %c0_i32 = arith.constant 0 : i32
    %c0_i32_0 = arith.constant 0 : i32
    %c0_i32_1 = arith.constant 0 : i32
    return %c0_i32, %c0_i32_0 : i32, i32
  }
  func.func @transform_3(%arg0: i32) -> (i32, i32) {
    %c0_i32 = arith.constant 0 : i32
    %c0_i32_0 = arith.constant 0 : i32
    %c0_i32_1 = arith.constant 0 : i32
    return %c0_i32, %c0_i32_0 : i32, i32
  }
  func.func @transform_4(%arg0: i32) -> (i32, i32) {
    %c0_i32 = arith.constant 0 : i32
    %c0_i32_0 = arith.constant 0 : i32
    %c0_i32_1 = arith.constant 0 : i32
    return %c0_i32, %c0_i32_0 : i32, i32
  }
  func.func @transform_5(%arg0: i32) -> (i32, i32) {
    %c0_i32 = arith.constant 0 : i32
    %c0_i32_0 = arith.constant 0 : i32
    %c0_i32_1 = arith.constant 0 : i32
    return %c0_i32, %c0_i32_0 : i32, i32
  }
  func.func @transform_6(%arg0: i32) -> (i32, i32) {
    %c0_i32 = arith.constant 0 : i32
    %c0_i32_0 = arith.constant 0 : i32
    %c0_i32_1 = arith.constant 0 : i32
    return %c0_i32, %c0_i32_0 : i32, i32
  }
  func.func @transform_7(%arg0: i32) -> (i32, i32) {
    %c0_i32 = arith.constant 0 : i32
    %c0_i32_0 = arith.constant 0 : i32
    return %c0_i32, %arg0 : i32, i32
  }
}

</mosaic_0001>

<llo_original>
// kernel: tpu_custom_call.1
$region0: #{tpu_custom_call.1}
  #allocation0 [shape = 'u32[]', space=smem, size = 0x4, offset = 0x4, fixed_abs, tag = 'smem constant byte address 0x4 - core index']
  #allocation1 [shape = 'u32[144,128]{1,0:T(1,128)}', space=vmem, size = 0x12000, scoped, tag = 'internal scratch']
  %s0 = inlined_call_operand.vmem [shape: f32[256,32], index: 0, kind: input, shape index: {}]
  %s1 = inlined_call_operand.vmem [shape: bf16[24,32], index: 1, kind: input, shape index: {}]
  %s2 = inlined_call_operand.vmem [shape: f32[24,1], index: 2, kind: input, shape index: {}]
  %s3 = inlined_call_operand.vmem [shape: bf16[16,24], index: 3, kind: input, shape index: {}]
  %s4 = inlined_call_operand.vmem [shape: f32[16,1], index: 4, kind: input, shape index: {}]
  %s5 = inlined_call_operand.vmem [shape: bf16[8,16], index: 5, kind: input, shape index: {}]
  %s6 = inlined_call_operand.vmem [shape: f32[8,1], index: 6, kind: input, shape index: {}]
  %s7 = inlined_call_operand.hbm [shape: f32[8,256], index: 7, kind: output, shape index: {}]
  %s8 = sld [smem:[#allocation0]]
  $region38: #{tpu_custom_call.1} parent=0
    _
  %s10 = ssub.s32 1, %s8
  %s11 = scalar_select 0, %s10, %s8
  $region1: #{tpu_custom_call.1} parent=0
    #allocation2 [shape = 'u8[8192]{0}', space=vmem, size = 0x2000, scoped, tag = 'output window, operand 0, single buffered']
    #allocation3 [shape = 's32[1]{0}', space=sflag, size = 0x4, scoped, tag = 'scoped memory for tpu_custom_call.1']
    %12 = vsyncpa [#allocation3], 0
    // Predicated region
    $region2: #{tpu_custom_call.1} parent=1 // pred_check
      _
    $region3: #{tpu_custom_call.1} parent=1 // pred_check_branch
      %14 = sbr.rel (0) target = $region5
    $region4: #{tpu_custom_call.1} parent=1 // pred_region
      _
    $region5: #{tpu_custom_call.1} parent=1 // pred_fallthru
      _
    // Predicated region
    $region6: #{tpu_custom_call.1} parent=1 // pred_check
      _
    $region7: #{tpu_custom_call.1} parent=1 // pred_check_branch
      %16 = sbr.rel (0) target = $region9
    $region8: #{tpu_custom_call.1} parent=1 // pred_region
      _
    $region9: #{tpu_custom_call.1} parent=1 // pred_fallthru
      _
    // Predicated region
    $region10: #{tpu_custom_call.1} parent=1 // pred_check
      _
    $region11: #{tpu_custom_call.1} parent=1 // pred_check_branch
      %18 = sbr.rel (0) target = $region13
    $region12: #{tpu_custom_call.1} parent=1 // pred_region
      _
    $region13: #{tpu_custom_call.1} parent=1 // pred_fallthru
      _
    // Predicated region
    $region14: #{tpu_custom_call.1} parent=1 // pred_check
      _
    $region15: #{tpu_custom_call.1} parent=1 // pred_check_branch
      %20 = sbr.rel (0) target = $region17
    $region16: #{tpu_custom_call.1} parent=1 // pred_region
      _
    $region17: #{tpu_custom_call.1} parent=1 // pred_fallthru
      _
    // Predicated region
    $region18: #{tpu_custom_call.1} parent=1 // pred_check
      _
    $region19: #{tpu_custom_call.1} parent=1 // pred_check_branch
      %22 = sbr.rel (0) target = $region21
    $region20: #{tpu_custom_call.1} parent=1 // pred_region
      _
    $region21: #{tpu_custom_call.1} parent=1 // pred_fallthru
      _
    // Predicated region
    $region22: #{tpu_custom_call.1} parent=1 // pred_check
      _
    $region23: #{tpu_custom_call.1} parent=1 // pred_check_branch
      %24 = sbr.rel (0) target = $region25
    $region24: #{tpu_custom_call.1} parent=1 // pred_region
      _
    $region25: #{tpu_custom_call.1} parent=1 // pred_fallthru
      _
    // Predicated region
    $region26: #{tpu_custom_call.1} parent=1 // pred_check
      _
    $region27: #{tpu_custom_call.1} parent=1 // pred_check_branch
      %26 = sbr.rel (0) target = $region29
    $region28: #{tpu_custom_call.1} parent=1 // pred_region
      _
    $region29: #{tpu_custom_call.1} parent=1 // pred_fallthru
      _
    %v28 = vld [vmem:[%s0] sm:$0xff]
    %v29 = vld [vmem:[%s0 + $0x8] sm:$0xff]
    %v30 = vld [vmem:[%s0 + $0x10] sm:$0xff]
    %v31 = vld [vmem:[%s0 + $0x18] sm:$0xff]
    %v32 = vld [vmem:[%s0 + $0x20] sm:$0xff]
    %v33 = vld [vmem:[%s0 + $0x28] sm:$0xff]
    %v34 = vld [vmem:[%s0 + $0x30] sm:$0xff]
    %v35 = vld [vmem:[%s0 + $0x38] sm:$0xff]
    %v36 = vld [vmem:[%s0 + $0x40] sm:$0xff]
    %v37 = vld [vmem:[%s0 + $0x48] sm:$0xff]
    %v38 = vld [vmem:[%s0 + $0x50] sm:$0xff]
    %v39 = vld [vmem:[%s0 + $0x58] sm:$0xff]
    %v40 = vld [vmem:[%s0 + $0x60] sm:$0xff]
    %v41 = vld [vmem:[%s0 + $0x68] sm:$0xff]
    %v42 = vld [vmem:[%s0 + $0x70] sm:$0xff]
    %v43 = vld [vmem:[%s0 + $0x78] sm:$0xff]
    %v44 = vld [vmem:[%s0 + $0x80] sm:$0xff]
    %v45 = vld [vmem:[%s0 + $0x88] sm:$0xff]
    %v46 = vld [vmem:[%s0 + $0x90] sm:$0xff]
    %v47 = vld [vmem:[%s0 + $0x98] sm:$0xff]
    %v48 = vld [vmem:[%s0 + $0xa0] sm:$0xff]
    %v49 = vld [vmem:[%s0 + $0xa8] sm:$0xff]
    %v50 = vld [vmem:[%s0 + $0xb0] sm:$0xff]
    %v51 = vld [vmem:[%s0 + $0xb8] sm:$0xff]
    %v52 = vld [vmem:[%s0 + $0xc0] sm:$0xff]
    %v53 = vld [vmem:[%s0 + $0xc8] sm:$0xff]
    %v54 = vld [vmem:[%s0 + $0xd0] sm:$0xff]
    %v55 = vld [vmem:[%s0 + $0xd8] sm:$0xff]
    %v56 = vld [vmem:[%s0 + $0xe0] sm:$0xff]
    %v57 = vld [vmem:[%s0 + $0xe8] sm:$0xff]
    %v58 = vld [vmem:[%s0 + $0xf0] sm:$0xff]
    %v59 = vld [vmem:[%s0 + $0xf8] sm:$0xff]
    %v60 = vpack.c.bf16 %v29, %v28
    %v61 = vpack.c.bf16 %v31, %v30
    %v62 = vpack.c.bf16 %v33, %v32
    %v63 = vpack.c.bf16 %v35, %v34
    %v64 = vpack.c.bf16 %v37, %v36
    %v65 = vpack.c.bf16 %v39, %v38
    %v66 = vpack.c.bf16 %v41, %v40
    %v67 = vpack.c.bf16 %v43, %v42
    %v68 = vpack.c.bf16 %v45, %v44
    %v69 = vpack.c.bf16 %v47, %v46
    %v70 = vpack.c.bf16 %v49, %v48
    %v71 = vpack.c.bf16 %v51, %v50
    %v72 = vpack.c.bf16 %v53, %v52
    %v73 = vpack.c.bf16 %v55, %v54
    %v74 = vpack.c.bf16 %v57, %v56
    %v75 = vpack.c.bf16 %v59, %v58
    %v76 = vld [vmem:[%s1] sm:$0xf]
    %v77 = vld [vmem:[%s1 + $0x4] sm:$0xf]
    %v78 = vld [vmem:[%s1 + $0x8] sm:$0xf]
    %v79 = vld [vmem:[%s2] sm:$0xff]
    %v80 = vld [vmem:[%s2 + $0x8] sm:$0xff]
    %v81 = vld [vmem:[%s2 + $0x10] sm:$0xff]
    %83 = vset.pattern.permute.xlu0 0
    %84 = vperm.xlu0 %83, %v79
    %v85 = vpop.permute.xlu0 %84
    %88 = vset.pattern.permute.xlu0 0
    %89 = vperm.xlu0 %88, %v80
    %v90 = vpop.permute.xlu0 %89
    %93 = vset.pattern.permute.xlu0 0
    %94 = vperm.xlu0 %93, %v81
    %v95 = vpop.permute.xlu0 %94
    %v100 = vunpack.c.l.b16 %v76
    %v101 = vunpack.c.l.b16 %v77
    %v102 = vunpack.c.l.b16 %v78
    %v103 = vpack.c.b16 %v101, %v100
    %v104 = vpack.c.b16 %v102, %v102
    %vm105 = vcmask 261120
    %v107 = vsel %vm105, %v103, 0
    %v110 = vsel %vm105, %v104, 0
    %v113 = vsel %vm105, %v60, 0
    %v116 = vsel %vm105, %v61, 0
    %v119 = vsel %vm105, %v62, 0
    %v122 = vsel %vm105, %v63, 0
    %v125 = vsel %vm105, %v64, 0
    %v128 = vsel %vm105, %v65, 0
    %v131 = vsel %vm105, %v66, 0
    %v134 = vsel %vm105, %v67, 0
    %v137 = vsel %vm105, %v68, 0
    %v140 = vsel %vm105, %v69, 0
    %v143 = vsel %vm105, %v70, 0
    %v146 = vsel %vm105, %v71, 0
    %v149 = vsel %vm105, %v72, 0
    %v152 = vsel %vm105, %v73, 0
    %v155 = vsel %vm105, %v74, 0
    %v158 = vsel %vm105, %v75, 0
    %160 = vmatprep.subr.bf16.mxu0 0
    %161 = vmatpush1.bf16.xpose.msra.mxu0 %v113
    %162 = vmatprep.subr.bf16.mxu0 0
    %163 = vmatpush1.bf16.xpose.msra.mxu0 %v116
    %164 = vmatprep.subr.bf16.mxu0 0
    %165 = vmatpush1.bf16.xpose.msra.mxu0 %v119
    %166 = vmatprep.subr.bf16.mxu0 0
    %167 = vmatpush1.bf16.xpose.msra.mxu0 %v122
    %168 = vmatprep.subr.bf16.mxu0 0
    %169 = vmatpush1.bf16.xpose.msra.mxu0 %v125
    %170 = vmatprep.subr.bf16.mxu0 0
    %171 = vmatpush1.bf16.xpose.msra.mxu0 %v128
    %172 = vmatprep.subr.bf16.mxu0 0
    %173 = vmatpush1.bf16.xpose.msra.mxu0 %v131
    %174 = vmatprep.subr.bf16.mxu0 0
    %175 = vmatpush1.bf16.xpose.msra.mxu0 %v134
    %176 = vmatprep.subr.bf16.mxu0 0
    %177 = vmatpush1.bf16.xpose.msra.mxu0 %v137
    %178 = vmatprep.subr.bf16.mxu0 0
    %179 = vmatpush1.bf16.xpose.msra.mxu0 %v140
    %180 = vmatprep.subr.bf16.mxu0 0
    %181 = vmatpush1.bf16.xpose.msra.mxu0 %v143
    %182 = vmatprep.subr.bf16.mxu0 0
    %183 = vmatpush1.bf16.xpose.msra.mxu0 %v146
    %184 = vmatprep.subr.bf16.mxu0 0
    %185 = vmatpush1.bf16.xpose.msra.mxu0 %v149
    %186 = vmatprep.subr.bf16.mxu0 0
    %187 = vmatpush1.bf16.xpose.msra.mxu0 %v152
    %188 = vmatprep.subr.bf16.mxu0 0
    %189 = vmatpush1.bf16.xpose.msra.mxu0 %v155
    %190 = vmatprep.subr.bf16.mxu0 0
    %191 = vmatpush1.bf16.xpose.msra.mxu0 %v158
    %192 = vmatprep.mubr.bf16.mxu0 0
    %193 = vmatmul.mubr.bf16.gmra.mrb[0].mxu0 %v107
    %v194 = vpop.f32.mrb[0].mxu0
    %v195 = vadd.f32 %v85, %v194
    %v196 = vpop.f32.mrb[0].mxu0
    %v197 = vadd.f32 %v85, %v196
    %v198 = vpop.f32.mrb[0].mxu0
    %v199 = vadd.f32 %v90, %v198
    %v200 = vpop.f32.mrb[0].mxu0
    %v201 = vadd.f32 %v90, %v200
    %202 = vmatprep.mubr.bf16.mxu0 0
    %203 = vmatmul.mubr.bf16.gmra.mrb[0].mxu0 %v110
    %v204 = vpop.f32.mrb[0].mxu0
    %v205 = vadd.f32 %v95, %v204
    %v206 = vpop.f32.mrb[0].mxu0
    %v207 = vadd.f32 %v95, %v206
    %v208 = vpop.f32.mrb[0].mxu0
    %v209 = vpop.f32.mrb[0].mxu0
    %210 = vdwg.mxu0
    %v211 = vmax.f32 %v195, 0.0
    %v212 = vmax.f32 %v197, 0.0
    %v213 = vmax.f32 %v199, 0.0
    %v214 = vmax.f32 %v201, 0.0
    %v215 = vmax.f32 %v205, 0.0
    %v216 = vmax.f32 %v207, 0.0
    %v217 = vld [vmem:[%s3] sm:$0xf]
    %v218 = vld [vmem:[%s3 + $0x4] sm:$0xf]
    %v219 = vpack.c.bf16 %v213, %v211
    %v220 = vpack.c.bf16 %v214, %v212
    %v221 = vpack.c.bf16 %v215, %v215
    %v222 = vpack.c.bf16 %v216, %v216
    %v223 = vld [vmem:[%s4] sm:$0xff]
    %v224 = vld [vmem:[%s4 + $0x8] sm:$0xff]
    %226 = vset.pattern.permute.xlu0 0
    %227 = vperm.xlu0 %226, %v223
    %v228 = vpop.permute.xlu0 %227
    %231 = vset.pattern.permute.xlu0 0
    %232 = vperm.xlu0 %231, %v224
    %v233 = vpop.permute.xlu0 %232
    %v237 = vunpack.c.l.b16 %v217
    %v238 = vunpack.c.l.b16 %v218
    %v239 = vpack.c.b16 %v238, %v237
    %vm240 = vcmask 195584
    %v242 = vsel %vm240, %v239, 0
    %vm244 = vcmask 1043456
    %v246 = vsel %vm244, %v221, 0
    %v249 = vsel %vm244, %v222, 0
    %251 = vmatprep.subr.bf16.mxu0 %v220
    %252 = vmatpush1.bf16.msra.mxu0 %v219
    %253 = vmatprep.subr.bf16.mxu0 %v249
    %254 = vmatpush1.bf16.msra.mxu0 %v246
    %255 = vmatprep.subr.bf16.mxu0 0
    %256 = vmatpush1.bf16.msra.mxu0 0
    %257 = vmatprep.subr.bf16.mxu0 0
    %258 = vmatpush1.bf16.msra.mxu0 0
    %259 = vmatprep.subr.bf16.mxu0 0
    %260 = vmatpush1.bf16.msra.mxu0 0
    %261 = vmatprep.subr.bf16.mxu0 0
    %262 = vmatpush1.bf16.msra.mxu0 0
    %263 = vmatprep.subr.bf16.mxu0 0
    %264 = vmatpush1.bf16.msra.mxu0 0
    %265 = vmatprep.subr.bf16.mxu0 0
    %266 = vmatpush1.bf16.msra.mxu0 0
    %267 = vmatprep.subr.bf16.mxu0 0
    %268 = vmatpush1.bf16.msra.mxu0 0
    %269 = vmatprep.subr.bf16.mxu0 0
    %270 = vmatpush1.bf16.msra.mxu0 0
    %271 = vmatprep.subr.bf16.mxu0 0
    %272 = vmatpush1.bf16.msra.mxu0 0
    %273 = vmatprep.subr.bf16.mxu0 0
    %274 = vmatpush1.bf16.msra.mxu0 0
    %275 = vmatprep.subr.bf16.mxu0 0
    %276 = vmatpush1.bf16.msra.mxu0 0
    %277 = vmatprep.subr.bf16.mxu0 0
    %278 = vmatpush1.bf16.msra.mxu0 0
    %279 = vmatprep.subr.bf16.mxu0 0
    %280 = vmatpush1.bf16.msra.mxu0 0
    %281 = vmatprep.subr.bf16.mxu0 0
    %282 = vmatpush1.bf16.msra.mxu0 0
    %283 = vmatprep.mubr.bf16.mxu0 0
    %284 = vmatmul.mubr.bf16.gmra.mrb[0].mxu0 %v242
    %v285 = vpop.f32.mrb[0].mxu0
    %v286 = vadd.f32 %v228, %v285
    %v287 = vpop.f32.mrb[0].mxu0
    %v288 = vadd.f32 %v228, %v287
    %v289 = vpop.f32.mrb[0].mxu0
    %v290 = vadd.f32 %v233, %v289
    %v291 = vpop.f32.mrb[0].mxu0
    %v292 = vadd.f32 %v233, %v291
    %293 = vdwg.mxu0
    %v294 = vmax.f32 %v286, 0.0
    %v295 = vmax.f32 %v288, 0.0
    %v296 = vmax.f32 %v290, 0.0
    %v297 = vmax.f32 %v292, 0.0
    %v298 = vld [vmem:[%s5] sm:$0xf]
    %v299 = vpack.c.bf16 %v296, %v294
    %v300 = vpack.c.bf16 %v297, %v295
    %v301 = vld [vmem:[%s6] sm:$0xff]
    %303 = vset.pattern.permute.xlu0 0
    %304 = vperm.xlu0 %303, %v301
    %v305 = vpop.permute.xlu0 %304
    %vm307 = vcmask 130048
    %v309 = vsel %vm307, %v298, 0
    %311 = vmatprep.subr.bf16.mxu0 %v300
    %312 = vmatpush1.bf16.msra.mxu0 %v299
    %313 = vmatprep.subr.bf16.mxu0 0
    %314 = vmatpush1.bf16.msra.mxu0 0
    %315 = vmatprep.subr.bf16.mxu0 0
    %316 = vmatpush1.bf16.msra.mxu0 0
    %317 = vmatprep.subr.bf16.mxu0 0
    %318 = vmatpush1.bf16.msra.mxu0 0
    %319 = vmatprep.subr.bf16.mxu0 0
    %320 = vmatpush1.bf16.msra.mxu0 0
    %321 = vmatprep.subr.bf16.mxu0 0
    %322 = vmatpush1.bf16.msra.mxu0 0
    %323 = vmatprep.subr.bf16.mxu0 0
    %324 = vmatpush1.bf16.msra.mxu0 0
    %325 = vmatprep.subr.bf16.mxu0 0
    %326 = vmatpush1.bf16.msra.mxu0 0
    %327 = vmatprep.subr.bf16.mxu0 0
    %328 = vmatpush1.bf16.msra.mxu0 0
    %329 = vmatprep.subr.bf16.mxu0 0
    %330 = vmatpush1.bf16.msra.mxu0 0
    %331 = vmatprep.subr.bf16.mxu0 0
    %332 = vmatpush1.bf16.msra.mxu0 0
    %333 = vmatprep.subr.bf16.mxu0 0
    %334 = vmatpush1.bf16.msra.mxu0 0
    %335 = vmatprep.subr.bf16.mxu0 0
    %336 = vmatpush1.bf16.msra.mxu0 0
    %337 = vmatprep.subr.bf16.mxu0 0
    %338 = vmatpush1.bf16.msra.mxu0 0
    %339 = vmatprep.subr.bf16.mxu0 0
    %340 = vmatpush1.bf16.msra.mxu0 0
    %341 = vmatprep.subr.bf16.mxu0 0
    %342 = vmatpush1.bf16.msra.mxu0 0
    %343 = vmatprep.mubr.bf16.mxu0 0
    %344 = vmatmul.mubr.bf16.gmra.mrb[0].mxu0 %v309
    %v345 = vpop.f32.mrb[0].mxu0
    %v346 = vadd.f32 %v305, %v345
    %v347 = vpop.f32.mrb[0].mxu0
    %v348 = vadd.f32 %v305, %v347
    %v349 = vpop.f32.mrb[0].mxu0
    %v350 = vpop.f32.mrb[0].mxu0
    %351 = vdwg.mxu0
    %v352 = vrot.slane %v346, 4
    %v353 = vmax.f32 %v346, %v352
    %v354 = vrot.slane %v353, 2
    %v355 = vmax.f32 %v353, %v354
    %v356 = vrot.slane %v355, 1
    %v357 = vmax.f32 %v355, %v356
    %v358 = vrot.slane %v348, 4
    %v359 = vmax.f32 %v348, %v358
    %v360 = vrot.slane %v359, 2
    %v361 = vmax.f32 %v359, %v360
    %v362 = vrot.slane %v361, 1
    %v363 = vmax.f32 %v361, %v362
    %v364 = vsub.f32 %v346, %v357
    %v365 = vsub.f32 %v348, %v363
    %v366 = vmul.f32 %v364, 1.442695
    %v367 = vpow.pop %v366
    %v368 = vmul.f32 %v365, 1.442695
    %v369 = vpow.pop %v368
    %v370 = vrot.slane %v367, 4
    %v371 = vadd.f32 %v367, %v370
    %v372 = vrot.slane %v371, 2
    %v373 = vadd.f32 %v371, %v372
    %v374 = vrot.slane %v373, 1
    %v375 = vadd.f32 %v373, %v374
    %v376 = vrot.slane %v369, 4
    %v377 = vadd.f32 %v369, %v376
    %v378 = vrot.slane %v377, 2
    %v379 = vadd.f32 %v377, %v378
    %v380 = vrot.slane %v379, 1
    %v381 = vadd.f32 %v379, %v380
    %v382 = vlog2.pop %v375
    %v383 = vmul.f32 %v382, 0.6931472
    %v384 = vlog2.pop %v381
    %v385 = vmul.f32 %v384, 0.6931472
    %v386 = vsub.f32 %v364, %v383
    %v387 = vsub.f32 %v365, %v385
    %388 = vst [vmem:[#allocation2] sm:$0xff] %v386
    %389 = vst [vmem:[#allocation2 + $0x8] sm:$0xff] %v387
    // Predicated region
    $region30: #{tpu_custom_call.1} parent=1 // pred_check
      _
    $region31: #{tpu_custom_call.1} parent=1 // pred_check_branch
      %391 = sbr.rel (0) target = $region33
    $region32: #{tpu_custom_call.1} parent=1 // pred_region
      %s393 = ssub.s32 256, 256
      %394 = vsyncadd [#allocation3], %s393
      %s396 = sshll.u32 [#allocation2], 4
      %s397 = int_to_ptr.vmem [resolvable:$true] %s396
      %399 = dma.vmem_to_hbm [thread:$0]  %s397, 256, %s7, [#allocation3]
    $region33: #{tpu_custom_call.1} parent=1 // pred_fallthru
      _
    // Predicated region
    $region34: #{tpu_custom_call.1} parent=1 // pred_check
      _
    $region35: #{tpu_custom_call.1} parent=1 // pred_check_branch
      %401 = sbr.rel (0) target = $region37
    $region36: #{tpu_custom_call.1} parent=1 // pred_region
      %402 = dma.done [#allocation3], 256
    $region37: #{tpu_custom_call.1} parent=1 // pred_fallthru
      _
    %403 = vsyncpa [#allocation3], 1

</llo_original>
